<compile_context>
chip_gen: v7x
topology: tpu7x:2x2x1
jax: 0.10.0
libtpu: 0.0.40
codegen_flags: <defaults>
</compile_context>

<pallas_src>
from functools import partial

import jax
import jax.numpy as jnp
import numpy as np
from jax.experimental import pallas as pl
from jax.experimental.pallas import tpu as pltpu


# ----------------------------- kernels ------------------------------------ #

def _scale_norm_kernel(emb_ref, out_ref, *, scale, l2norm_embed):
    """Contiguous path: out_tile = emb_tile * scale (+ optional row l2norm)."""
    x = emb_ref[...].astype(jnp.float32) * scale
    if l2norm_embed:
        norm = jnp.sqrt(jnp.sum(x * x, axis=-1, keepdims=True))
        x = x / jnp.maximum(norm, 1e-12)        # F.normalize eps
    out_ref[...] = x.astype(out_ref.dtype)


def _gather_scale_norm_kernel(pos_ref, emb_ref, out_ref, *, scale, l2norm_embed):
    """Gather path: emb row selected by the index_map via scalar prefetch."""
    del pos_ref  # consumed by the BlockSpec index_map
    x = emb_ref[...].astype(jnp.float32) * scale
    if l2norm_embed:
        norm = jnp.sqrt(jnp.sum(x * x, axis=-1, keepdims=True))
        x = x / jnp.maximum(norm, 1e-12)
    out_ref[...] = x.astype(out_ref.dtype)


# ----------------------------- wrapper ------------------------------------ #

def absolute_positional_embedding(emb, seq_len, *, pos=None, seq_start_pos=None,
                                  l2norm_embed=False, tile_rows=256):
    """emb: (max_seq_len, dim). Returns (seq_len, dim) or pos.shape + (dim,)."""
    max_seq_len, dim = emb.shape
    assert seq_len <= max_seq_len, (
        f"sequence length {seq_len} exceeds max_seq_len {max_seq_len}")
    scale = 1.0 if l2norm_embed else dim ** (-0.5)

    # -------- fast path: pos is arange(seq_len) → contiguous slice + scale --
    if pos is None and seq_start_pos is None:
        tile = min(tile_rows, seq_len)
        grid = (pl.cdiv(seq_len, tile),)
        kernel = partial(_scale_norm_kernel, scale=scale, l2norm_embed=l2norm_embed)
        return pl.pallas_call(
            kernel,
            out_shape=jax.ShapeDtypeStruct((seq_len, dim), emb.dtype),
            grid=grid,
            in_specs=[pl.BlockSpec((tile, dim), lambda t: (t, 0))],
            out_specs=pl.BlockSpec((tile, dim), lambda t: (t, 0)),
            compiler_params=pltpu.CompilerParams(
                dimension_semantics=("parallel",)),
        )(emb)

    # -------- general path: arbitrary positions → scalar-prefetch gather ----
    if pos is None:
        pos = jnp.arange(seq_len, dtype=jnp.int32)
    pos = pos.astype(jnp.int32)
    if seq_start_pos is not None:
        pos = jnp.maximum(pos - seq_start_pos[..., None].astype(jnp.int32), 0)

    out_batch_shape = pos.shape
    pos_flat = pos.reshape(-1)
    n = pos_flat.shape[0]

    kernel = partial(_gather_scale_norm_kernel, scale=scale,
                     l2norm_embed=l2norm_embed)
    out = pl.pallas_call(
        kernel,
        out_shape=jax.ShapeDtypeStruct((n, dim), emb.dtype),
        grid_spec=pltpu.PrefetchScalarGridSpec(
            num_scalar_prefetch=1,
            grid=(n,),
            in_specs=[pl.BlockSpec((1, dim), lambda r, pos_ref: (pos_ref[r], 0))],
            out_specs=pl.BlockSpec((1, dim), lambda r, pos_ref: (r, 0)),
        ),
        compiler_params=pltpu.CompilerParams(
            dimension_semantics=("arbitrary",)),
    )(pos_flat, emb)
    return out.reshape(*out_batch_shape, dim)


# ---------------------------- pure-JAX reference --------------------------- #

def _reference(emb, seq_len, pos=None, seq_start_pos=None, l2norm_embed=False):
    dim = emb.shape[1]
    scale = 1.0 if l2norm_embed else dim ** (-0.5)
    if pos is None:
        pos = jnp.arange(seq_len, dtype=jnp.int32)
    if seq_start_pos is not None:
        pos = jnp.maximum(pos - seq_start_pos[..., None], 0)
    pe = jnp.take(emb, pos, axis=0) * scale
    if l2norm_embed:
        pe = pe / jnp.maximum(jnp.sqrt(jnp.sum(pe * pe, axis=-1, keepdims=True)),
                              1e-12)
    return pe


# --------------------------------- test ------------------------------------ #

if __name__ == "__main__":
    key = jax.random.PRNGKey(0)
    max_seq_len, dim = 64, 128          # dim multiple of 128 → lane-dense tiles
    batch, seq_len = 2, 16

    # deterministic "nn.Embedding(max_seq_len, dim)" weights ~ N(0, 1)
    emb = jax.random.normal(key, (max_seq_len, dim), dtype=jnp.float32)
    x = jnp.zeros((batch, seq_len), dtype=jnp.int32)   # only x.shape[1] matters

    # 1) default forward: pos=None, seq_start_pos=None, l2norm_embed=False
    out = absolute_positional_embedding(emb, x.shape[1])
    out = jax.block_until_ready(out)
    ref = _reference(emb, seq_len)
    assert out.shape == (seq_len, dim)
    assert np.allclose(np.asarray(out), np.asarray(ref), atol=1e-6), "default path mismatch"

    # 2) per-batch seq_start_pos → gather path, output (batch, seq_len, dim)
    seq_start_pos = jnp.array([0, 5], dtype=jnp.int32)
    out2 = absolute_positional_embedding(emb, seq_len, seq_start_pos=seq_start_pos)
    out2 = jax.block_until_ready(out2)
    ref2 = _reference(emb, seq_len, seq_start_pos=seq_start_pos)
    assert out2.shape == (batch, seq_len, dim)
    assert np.allclose(np.asarray(out2), np.asarray(ref2), atol=1e-6), "gather path mismatch"

    # 3) l2norm_embed variant (scale = 1.0, per-row l2 normalization)
    out3 = absolute_positional_embedding(emb, seq_len, l2norm_embed=True)
    out3 = jax.block_until_ready(out3)
    ref3 = _reference(emb, seq_len, l2norm_embed=True)
    assert np.allclose(np.asarray(out3), np.asarray(ref3), atol=1e-5), "l2norm path mismatch"

    print("KERNEL_OK")
</pallas_src>

<mosaic_0001>
module attributes {stable_mosaic.version = 11 : i64} {
  func.func @_scale_norm_kernel(%arg0: i32, %arg1: memref<16x128xf32, #tpu.memory_space<vmem>>, %arg2: memref<16x128xf32, #tpu.memory_space<vmem>>) attributes {dimension_semantics = [#tpu.dimension_semantics<parallel>], iteration_bounds = array<i64: 1>, scalar_prefetch = 0 : i64, scratch_operands = 0 : i64, tpu.core_type = #tpu.core_type<tc>, window_params = [{transform_indices = @transform_0, window_bounds = array<i64: 16, 128>}, {transform_indices = @transform_1, window_bounds = array<i64: 16, 128>}]} {
    %c0 = arith.constant 0 : index
    %c0_0 = arith.constant 0 : index
    %0 = vector.load %arg1[%c0, %c0_0] : memref<16x128xf32, #tpu.memory_space<vmem>>, vector<16x128xf32>
    %cst = arith.constant 0.0883883461 : f32
    %1 = vector.broadcast %cst : f32 to vector<16x128xf32>
    %2 = arith.mulf %0, %1 : vector<16x128xf32>
    %c0_1 = arith.constant 0 : index
    %c0_2 = arith.constant 0 : index
    %3 = vector.load %arg2[%c0_1, %c0_2] : memref<16x128xf32, #tpu.memory_space<vmem>>, vector<16x128xf32>
    tpu.vector_store %arg2[%c0_1, %c0_2], %2 {strides = array<i32>} : memref<16x128xf32, #tpu.memory_space<vmem>>, vector<16x128xf32>,
    return
  }
  func.func @transform_0(%arg0: i32) -> (i32, i32) {
    %c0_i32 = arith.constant 0 : i32
    %c0_i32_0 = arith.constant 0 : i32
    return %arg0, %c0_i32 : i32, i32
  }
  func.func @transform_1(%arg0: i32) -> (i32, i32) {
    %c0_i32 = arith.constant 0 : i32
    %c0_i32_0 = arith.constant 0 : i32
    return %arg0, %c0_i32 : i32, i32
  }
}

</mosaic_0001>

<llo_original>
// kernel: tpu_custom_call.1
$region0: #{tpu_custom_call.1}
  #allocation0 [shape = 'u32[]', space=smem, size = 0x4, offset = 0x4, fixed_abs, tag = 'smem constant byte address 0x4 - core index']
  #allocation1 [shape = 'u32[144,128]{1,0:T(1,128)}', space=vmem, size = 0x12000, scoped, tag = 'internal scratch']
  %s0 = inlined_call_operand.hbm [shape: f32[64,128], index: 0, kind: input, shape index: {}]
  %s1 = inlined_call_operand.hbm [shape: f32[16,128], index: 1, kind: output, shape index: {}]
  %s2 = sld [smem:[#allocation0]]
  $region18: #{tpu_custom_call.1} parent=0
    _
  %s4 = ssub.s32 1, %s2
  %s5 = scalar_select 0, %s4, %s2
  $region1: #{tpu_custom_call.1} parent=0
    #allocation2 [shape = 'u8[8192]{0}', space=vmem, size = 0x2000, scoped, tag = 'input window, operand 0, single buffered']
    #allocation3 [shape = 's32[1]{0}', space=sflag, size = 0x4, scoped, tag = 'scoped memory for tpu_custom_call.1']
    #allocation4 [shape = 's32[1]{0}', space=sflag, size = 0x4, scoped, tag = 'scoped memory for tpu_custom_call.1']
    #allocation5 [shape = 'u8[8192]{0}', space=vmem, size = 0x2000, scoped, tag = 'output window, operand 0, single buffered']
    %6 = vsyncpa [#allocation3], 0
    %7 = vsyncpa [#allocation4], 0
    // Predicated region
    $region2: #{tpu_custom_call.1} parent=1 // pred_check
      _
    $region3: #{tpu_custom_call.1} parent=1 // pred_check_branch
      %9 = sbr.rel (0) target = $region5
    $region4: #{tpu_custom_call.1} parent=1 // pred_region
      %s11 = ssub.s32 256, 256
      %12 = vsyncadd [#allocation3], %s11
      %s13 = sshll.u32 [#allocation2], 4
      %s14 = int_to_ptr.vmem [resolvable:$true] %s13
      %19 = dma.hbm_to_vmem [thread:$0]  %s0, 256, %s14, [#allocation3], 128, 128, 8
    $region5: #{tpu_custom_call.1} parent=1 // pred_fallthru
      _
    // Predicated region
    $region6: #{tpu_custom_call.1} parent=1 // pred_check
      _
    $region7: #{tpu_custom_call.1} parent=1 // pred_check_branch
      %21 = sbr.rel (0) target = $region9
    $region8: #{tpu_custom_call.1} parent=1 // pred_region
      %22 = dma.done [#allocation3], 256
    $region9: #{tpu_custom_call.1} parent=1 // pred_fallthru
      _
    %v23 = vld [vmem:[#allocation2] sm:$0xff]
    %v24 = vld [vmem:[#allocation2 + $0x8] sm:$0xff]
    %v25 = vmul.f32 %v23, 0.088388346
    %v26 = vmul.f32 %v24, 0.088388346
    %27 = vst [vmem:[#allocation5] sm:$0xff] %v25
    %28 = vst [vmem:[#allocation5 + $0x8] sm:$0xff] %v26
    // Predicated region
    $region10: #{tpu_custom_call.1} parent=1 // pred_check
      _
    $region11: #{tpu_custom_call.1} parent=1 // pred_check_branch
      %30 = sbr.rel (0) target = $region13
    $region12: #{tpu_custom_call.1} parent=1 // pred_region
      %s32 = ssub.s32 256, 256
      %33 = vsyncadd [#allocation4], %s32
      %s34 = sshll.u32 [#allocation5], 4
      %s35 = int_to_ptr.vmem [resolvable:$true] %s34
      %40 = dma.vmem_to_hbm [thread:$0]  %s35, 256, %s1, [#allocation4], 128, 128, 8
    $region13: #{tpu_custom_call.1} parent=1 // pred_fallthru
      _
    // Predicated region
    $region14: #{tpu_custom_call.1} parent=1 // pred_check
      _
    $region15: #{tpu_custom_call.1} parent=1 // pred_check_branch
      %42 = sbr.rel (0) target = $region17
    $region16: #{tpu_custom_call.1} parent=1 // pred_region
      %43 = dma.done [#allocation4], 256
    $region17: #{tpu_custom_call.1} parent=1 // pred_fallthru
      _
    %44 = vsyncpa [#allocation3], 1
    %45 = vsyncpa [#allocation4], 1

</llo_original>
